<compile_context>
chip_gen: v5e
topology: v5e:2x2
jax: 0.10.0
libtpu: 0.0.40
codegen_flags: <defaults>
</compile_context>

<pallas_src>
import functools

import jax
import jax.numpy as jnp
from jax.experimental import pallas as pl
from jax.experimental.pallas import tpu as pltpu

LANE = 128
SUBLANE = 8
TILE_B_MAX = 1024  # rows per batch tile (multiple of 128 when multi-tile)


def _round_up(n, m):
    return (n + m - 1) // m * m


def _cdiv(a, b):
    return -(-a // b)


def _choose_tiling(batch, tile_b_max):
    """Pick (tile_b, b_pad, grid) for the 1-D batch grid.

    - batch <= 256: one full-extent tile (multiple of 16 rows).
    - batch  > 256: tiles are multiples of 128 rows (lane-dense transposed
      output block) and there are >= 2 grid steps so both v7x TensorCores get
      work. Padded-row waste is < one tile; it is sliced off in the wrapper.
    """
    b16 = _round_up(batch, 16)
    if b16 <= 256:
        tile = b16
        return tile, tile, 1
    blocks = _cdiv(b16, LANE)                       # 128-row units
    max_blocks_per_tile = max(1, tile_b_max // LANE)
    n_tiles = max(2, _cdiv(blocks, max_blocks_per_tile))
    tile_blocks = _cdiv(blocks, n_tiles)
    tile = tile_blocks * LANE
    grid = _cdiv(blocks, tile_blocks)
    return tile, grid * tile, grid


def coral_kernel(x_ref, w1_ref, b1_ref, w2_ref, b2_ref, w3t_ref, bias_ref, out_ref):
    # x arrives as f32; cast to bf16 on-core (hidden under the DMA shadow).
    x = x_ref[...].astype(jnp.bfloat16)

    # Encoder layer 1: bf16 MXU matmul, f32 accumulate, f32 bias + ReLU.
    h1 = jnp.dot(x, w1_ref[...], preferred_element_type=jnp.float32)
    h1 = jnp.maximum(h1 + b1_ref[...], 0.0)

    # Encoder layer 2.
    h2 = jnp.dot(h1.astype(jnp.bfloat16), w2_ref[...],
                 preferred_element_type=jnp.float32)
    h2 = jnp.maximum(h2 + b2_ref[...], 0.0)

    # Transposed CORAL head:
    #   logits_t[k, b] = h2[b, :] . w3 + (b3 - cumsum(softplus(thr))[k])
    # w3t_ref holds w3^T replicated along sublanes, so this is an A @ B^T
    # ("q @ k^T"-style) matmul producing an (out_sub, tile_b) lane-dense block.
    logits_t = jax.lax.dot_general(
        w3t_ref[...], h2.astype(jnp.bfloat16),
        dimension_numbers=(((1,), (1,)), ((), ())),
        preferred_element_type=jnp.float32)
    out_ref[...] = jax.nn.sigmoid(logits_t + bias_ref[...])


@functools.partial(jax.jit, static_argnames=("tile_b_max",))
def coral_forward(x, params, *, tile_b_max=TILE_B_MAX):
    """CORAL ordinal MLP forward pass (eval mode) via a Pallas TPU kernel."""
    w1, b1, w2, b2, w3, b3, raw_thresholds = params
    batch, input_dim = x.shape
    h1_dim = w1.shape[1]
    h2_dim = w2.shape[1]
    num_cuts = raw_thresholds.shape[0]            # K - 1
    out_sub = _round_up(num_cuts, SUBLANE)        # pad cut rows to a sublane group

    h1p = _round_up(h1_dim, LANE)
    h2p = _round_up(h2_dim, LANE)

    # ---- parameter preprocessing (tiny; fused / constant-folded under jit) ----
    # Zero-pad hidden dims to 128 lanes (exactly neutral through ReLU / zeros).
    w1p = jnp.pad(w1, ((0, 0), (0, h1p - h1_dim))).astype(jnp.bfloat16)
    b1p = jnp.pad(b1, ((0, 0), (0, h1p - h1_dim)))
    w2p = jnp.pad(w2, ((0, h1p - h1_dim), (0, h2p - h2_dim))).astype(jnp.bfloat16)
    b2p = jnp.pad(b2, ((0, 0), (0, h2p - h2_dim)))

    # w3^T padded to h2p and replicated across out_sub sublanes (rows identical).
    w3t = jnp.broadcast_to(
        jnp.pad(w3, ((0, h2p - h2_dim), (0, 0))).T, (out_sub, h2p)
    ).astype(jnp.bfloat16)
    # Fold output bias + CORAL thresholds: bias[k] = b3 - cumsum(softplus(thr))[k].
    thr = jnp.cumsum(jax.nn.softplus(raw_thresholds))              # (K-1,)
    bias = jnp.pad(b3[0, 0] - thr, (0, out_sub - num_cuts)).reshape(out_sub, 1)

    # ---- batch tiling ----------------------------------------------------------
    tile_b, b_pad, _ = _choose_tiling(batch, tile_b_max)
    xp = jnp.pad(x, ((0, b_pad - batch), (0, 0))) if b_pad != batch else x
    grid = (b_pad // tile_b,)

    out_t = pl.pallas_call(
        coral_kernel,
        out_shape=jax.ShapeDtypeStruct((out_sub, b_pad), jnp.float32),
        grid=grid,
        in_specs=[
            pl.BlockSpec((tile_b, input_dim), lambda i: (i, 0)),  # x: streamed over batch
            pl.BlockSpec((input_dim, h1p), lambda i: (0, 0)),     # weights: VMEM-resident
            pl.BlockSpec((1, h1p), lambda i: (0, 0)),
            pl.BlockSpec((h1p, h2p), lambda i: (0, 0)),
            pl.BlockSpec((1, h2p), lambda i: (0, 0)),
            pl.BlockSpec((out_sub, h2p), lambda i: (0, 0)),
            pl.BlockSpec((out_sub, 1), lambda i: (0, 0)),
        ],
        out_specs=pl.BlockSpec((out_sub, tile_b), lambda i: (0, i)),
        compiler_params=pltpu.CompilerParams(
            dimension_semantics=("parallel",),
        ),
    )(xp, w1p, b1p, w2p, b2p, w3t, bias)

    # (out_sub, b_pad) -> (batch, num_cuts); tiny slice + transpose, fused by jit.
    return out_t[:num_cuts, :batch].T


def init_params(key, input_dim, hidden_layers, num_classes):
    """Deterministic synthetic parameter init (matches module shapes)."""
    keys = jax.random.split(key, 6)
    h1, h2 = hidden_layers
    w1 = jax.random.normal(keys[0], (input_dim, h1), jnp.float32) * 0.1
    b1 = jax.random.normal(keys[1], (1, h1), jnp.float32) * 0.01
    w2 = jax.random.normal(keys[2], (h1, h2), jnp.float32) * 0.1
    b2 = jax.random.normal(keys[3], (1, h2), jnp.float32) * 0.01
    w3 = jax.random.normal(keys[4], (h2, 1), jnp.float32) * 0.1
    b3 = jax.random.normal(keys[5], (1, 1), jnp.float32) * 0.01
    # thresholds initialised exactly as in the module: arange(num_classes - 1)
    raw_thresholds = jnp.arange(num_classes - 1, dtype=jnp.float32)
    return (w1, b1, w2, b2, w3, b3, raw_thresholds)


def reference_forward(x, params):
    """Pure-JAX f32 reference mirroring the PyTorch forward (eval mode)."""
    w1, b1, w2, b2, w3, b3, raw_thresholds = params
    h = jnp.maximum(x @ w1 + b1, 0.0)
    h = jnp.maximum(h @ w2 + b2, 0.0)
    logit = h @ w3 + b3
    thr = jnp.cumsum(jax.nn.softplus(raw_thresholds)).reshape(1, -1)
    return jax.nn.sigmoid(logit - thr)


if __name__ == "__main__":
    input_dim = 32
    hidden_layers = [128, 64]
    num_classes = 4

    key = jax.random.PRNGKey(0)
    k_x, k_p, k_x2 = jax.random.split(key, 3)
    params = init_params(k_p, input_dim, hidden_layers, num_classes)

    # Small demo batch (single grid step).
    x = jax.random.normal(k_x, (8, input_dim), jnp.float32)
    probas = jax.block_until_ready(coral_forward(x, params))
    ref = reference_forward(x, params)
    assert probas.shape == (8, num_classes - 1)
    # bf16 matmul operands (f32 accumulation) -> loosened tolerance vs f32 ref.
    assert jnp.allclose(probas, ref, atol=3e-2, rtol=3e-2), (
        float(jnp.max(jnp.abs(probas - ref))))

    # Larger, non-tile-aligned batch: exercises multi-step grid + batch padding.
    x2 = jax.random.normal(k_x2, (300, input_dim), jnp.float32)
    probas2 = jax.block_until_ready(coral_forward(x2, params))
    ref2 = reference_forward(x2, params)
    assert probas2.shape == (300, num_classes - 1)
    assert jnp.allclose(probas2, ref2, atol=3e-2, rtol=3e-2), (
        float(jnp.max(jnp.abs(probas2 - ref2))))

    # predict_class equivalent (glue, outside kernel): sum(probas > 0.5, axis=1)
    _ = jnp.sum(probas > 0.5, axis=1)

    print("KERNEL_OK")
</pallas_src>

<mosaic_0001>
module attributes {stable_mosaic.version = 11 : i64} {
  func.func @coral_kernel(%arg0: i32, %arg1: memref<16x32xf32, #tpu.memory_space<vmem>>, %arg2: memref<32x128xbf16, #tpu.memory_space<vmem>>, %arg3: memref<1x128xf32, #tpu.memory_space<vmem>>, %arg4: memref<128x128xbf16, #tpu.memory_space<vmem>>, %arg5: memref<1x128xf32, #tpu.memory_space<vmem>>, %arg6: memref<8x128xbf16, #tpu.memory_space<vmem>>, %arg7: memref<8x1xf32, #tpu.memory_space<vmem>>, %arg8: memref<8x16xf32, #tpu.memory_space<vmem>>) attributes {dimension_semantics = [#tpu.dimension_semantics<parallel>], iteration_bounds = array<i64: 1>, scalar_prefetch = 0 : i64, scratch_operands = 0 : i64, tpu.core_type = #tpu.core_type<tc>, window_params = [{transform_indices = @transform_0, window_bounds = array<i64: 16, 32>}, {pipeline_mode = #tpu.pipeline_mode<synchronous>, transform_indices = @transform_1, window_bounds = array<i64: 32, 128>}, {pipeline_mode = #tpu.pipeline_mode<synchronous>, transform_indices = @transform_2, window_bounds = array<i64: 1, 128>}, {pipeline_mode = #tpu.pipeline_mode<synchronous>, transform_indices = @transform_3, window_bounds = array<i64: 128, 128>}, {pipeline_mode = #tpu.pipeline_mode<synchronous>, transform_indices = @transform_4, window_bounds = array<i64: 1, 128>}, {pipeline_mode = #tpu.pipeline_mode<synchronous>, transform_indices = @transform_5, window_bounds = array<i64: 8, 128>}, {pipeline_mode = #tpu.pipeline_mode<synchronous>, transform_indices = @transform_6, window_bounds = array<i64: 8, 1>}, {transform_indices = @transform_7, window_bounds = array<i64: 8, 16>}]} {
    %c0 = arith.constant 0 : index
    %c0_0 = arith.constant 0 : index
    %0 = vector.load %arg1[%c0, %c0_0] : memref<16x32xf32, #tpu.memory_space<vmem>>, vector<16x32xf32>
    %1 = arith.truncf %0 : vector<16x32xf32> to vector<16x32xbf16>
    %c0_1 = arith.constant 0 : index
    %c0_2 = arith.constant 0 : index
    %2 = vector.load %arg2[%c0_1, %c0_2] : memref<32x128xbf16, #tpu.memory_space<vmem>>, vector<32x128xbf16>
    %cst = arith.constant dense<0.000000e+00> : vector<16x128xf32>
    %3 = tpu.matmul %1, %2, %cst {dimension_numbers = #tpu.dot_dimension_numbers<[1], [0], [0], [1], [0, 0, 1, 1], [], []>} : vector<16x32xbf16>, vector<32x128xbf16>, vector<16x128xf32> -> vector<16x128xf32>
    %c0_3 = arith.constant 0 : index
    %c0_4 = arith.constant 0 : index
    %4 = vector.load %arg3[%c0_3, %c0_4] : memref<1x128xf32, #tpu.memory_space<vmem>>, vector<1x128xf32>
    %5 = vector.broadcast %4 : vector<1x128xf32> to vector<16x128xf32>
    %6 = arith.addf %3, %5 : vector<16x128xf32>
    %cst_5 = arith.constant 0.000000e+00 : f32
    %7 = vector.broadcast %cst_5 : f32 to vector<16x128xf32>
    %8 = arith.maximumf %6, %7 : vector<16x128xf32>
    %9 = arith.truncf %8 : vector<16x128xf32> to vector<16x128xbf16>
    %c0_6 = arith.constant 0 : index
    %c0_7 = arith.constant 0 : index
    %10 = vector.load %arg4[%c0_6, %c0_7] : memref<128x128xbf16, #tpu.memory_space<vmem>>, vector<128x128xbf16>
    %cst_8 = arith.constant dense<0.000000e+00> : vector<16x128xf32>
    %11 = tpu.matmul %9, %10, %cst_8 {dimension_numbers = #tpu.dot_dimension_numbers<[1], [0], [0], [1], [0, 0, 1, 1], [], []>} : vector<16x128xbf16>, vector<128x128xbf16>, vector<16x128xf32> -> vector<16x128xf32>
    %c0_9 = arith.constant 0 : index
    %c0_10 = arith.constant 0 : index
    %12 = vector.load %arg5[%c0_9, %c0_10] : memref<1x128xf32, #tpu.memory_space<vmem>>, vector<1x128xf32>
    %13 = vector.broadcast %12 : vector<1x128xf32> to vector<16x128xf32>
    %14 = arith.addf %11, %13 : vector<16x128xf32>
    %cst_11 = arith.constant 0.000000e+00 : f32
    %15 = vector.broadcast %cst_11 : f32 to vector<16x128xf32>
    %16 = arith.maximumf %14, %15 : vector<16x128xf32>
    %c0_12 = arith.constant 0 : index
    %c0_13 = arith.constant 0 : index
    %17 = vector.load %arg6[%c0_12, %c0_13] : memref<8x128xbf16, #tpu.memory_space<vmem>>, vector<8x128xbf16>
    %18 = arith.truncf %16 : vector<16x128xf32> to vector<16x128xbf16>
    %cst_14 = arith.constant dense<0.000000e+00> : vector<8x16xf32>
    %19 = tpu.matmul %17, %18, %cst_14 {dimension_numbers = #tpu.dot_dimension_numbers<[1], [1], [0], [0], [0, 0, 1, 0], [], []>} : vector<8x128xbf16>, vector<16x128xbf16>, vector<8x16xf32> -> vector<8x16xf32>
    %c0_15 = arith.constant 0 : index
    %c0_16 = arith.constant 0 : index
    %20 = vector.load %arg7[%c0_15, %c0_16] : memref<8x1xf32, #tpu.memory_space<vmem>>, vector<8x1xf32>
    %21 = vector.broadcast %20 : vector<8x1xf32> to vector<8x16xf32>
    %22 = arith.addf %19, %21 : vector<8x16xf32>
    %23 = arith.negf %22 : vector<8x16xf32>
    %24 = math.exp %23 : vector<8x16xf32>
    %cst_17 = arith.constant 1.000000e+00 : f32
    %25 = vector.broadcast %cst_17 : f32 to vector<8x16xf32>
    %26 = arith.addf %25, %24 : vector<8x16xf32>
    %27 = arith.divf %25, %26 : vector<8x16xf32>
    %c0_18 = arith.constant 0 : index
    %c0_19 = arith.constant 0 : index
    %28 = vector.load %arg8[%c0_18, %c0_19] : memref<8x16xf32, #tpu.memory_space<vmem>>, vector<8x16xf32>
    tpu.vector_store %arg8[%c0_18, %c0_19], %27 {strides = array<i32>} : memref<8x16xf32, #tpu.memory_space<vmem>>, vector<8x16xf32>,
    return
  }
  func.func @transform_0(%arg0: i32) -> (i32, i32) {
    %c0_i32 = arith.constant 0 : i32
    %c0_i32_0 = arith.constant 0 : i32
    return %arg0, %c0_i32 : i32, i32
  }
  func.func @transform_1(%arg0: i32) -> (i32, i32) {
    %c0_i32 = arith.constant 0 : i32
    %c0_i32_0 = arith.constant 0 : i32
    %c0_i32_1 = arith.constant 0 : i32
    return %c0_i32, %c0_i32_0 : i32, i32
  }
  func.func @transform_2(%arg0: i32) -> (i32, i32) {
    %c0_i32 = arith.constant 0 : i32
    %c0_i32_0 = arith.constant 0 : i32
    %c0_i32_1 = arith.constant 0 : i32
    return %c0_i32, %c0_i32_0 : i32, i32
  }
  func.func @transform_3(%arg0: i32) -> (i32, i32) {
    %c0_i32 = arith.constant 0 : i32
    %c0_i32_0 = arith.constant 0 : i32
    %c0_i32_1 = arith.constant 0 : i32
    return %c0_i32, %c0_i32_0 : i32, i32
  }
  func.func @transform_4(%arg0: i32) -> (i32, i32) {
    %c0_i32 = arith.constant 0 : i32
    %c0_i32_0 = arith.constant 0 : i32
    %c0_i32_1 = arith.constant 0 : i32
    return %c0_i32, %c0_i32_0 : i32, i32
  }
  func.func @transform_5(%arg0: i32) -> (i32, i32) {
    %c0_i32 = arith.constant 0 : i32
    %c0_i32_0 = arith.constant 0 : i32
    %c0_i32_1 = arith.constant 0 : i32
    return %c0_i32, %c0_i32_0 : i32, i32
  }
  func.func @transform_6(%arg0: i32) -> (i32, i32) {
    %c0_i32 = arith.constant 0 : i32
    %c0_i32_0 = arith.constant 0 : i32
    %c0_i32_1 = arith.constant 0 : i32
    return %c0_i32, %c0_i32_0 : i32, i32
  }
  func.func @transform_7(%arg0: i32) -> (i32, i32) {
    %c0_i32 = arith.constant 0 : i32
    %c0_i32_0 = arith.constant 0 : i32
    return %c0_i32, %arg0 : i32, i32
  }
}

</mosaic_0001>

<llo_original>
// kernel: coral_forward.1
$region0: #{coral_forward.1}
  #allocation0 [shape = 'u32[]', space=smem, size = 0x4, offset = 0x4, fixed_abs, tag = 'smem constant byte address 0x4 - core index']
  #allocation1 [shape = 'u32[72,128]{1,0:T(1,128)}', space=vmem, size = 0x9000, scoped, tag = 'internal scratch']
  %s0 = inlined_call_operand.vmem [shape: f32[16,32], index: 0, kind: input, shape index: {}]
  %s1 = inlined_call_operand.vmem [shape: bf16[32,128], index: 1, kind: input, shape index: {}]
  %s2 = inlined_call_operand.vmem [shape: f32[1,128], index: 2, kind: input, shape index: {}]
  %s3 = inlined_call_operand.vmem [shape: bf16[128,128], index: 3, kind: input, shape index: {}]
  %s4 = inlined_call_operand.vmem [shape: f32[1,128], index: 4, kind: input, shape index: {}]
  %s5 = inlined_call_operand.vmem [shape: bf16[8,128], index: 5, kind: input, shape index: {}]
  %s6 = inlined_call_operand.vmem [shape: f32[8,1], index: 6, kind: input, shape index: {}]
  %s7 = inlined_call_operand.vmem [shape: f32[8,16], index: 7, kind: output, shape index: {}]
  %s8 = sld [smem:[#allocation0]]
  $region38: #{coral_forward.1} parent=0
    _
  %s10 = ssub.s32 1, %s8
  %s11 = scalar_select 0, %s10, %s8
  // Predicated region
  $region2: #{coral_forward.1} parent=0 // pred_check
    _
  $region3: #{coral_forward.1} parent=0 // pred_check_branch
    %13 = sbr.rel (0) target = $region5
  $region4: #{coral_forward.1} parent=0 // pred_region
    _
  $region5: #{coral_forward.1} parent=0 // pred_fallthru
    _
  // Predicated region
  $region6: #{coral_forward.1} parent=0 // pred_check
    _
  $region7: #{coral_forward.1} parent=0 // pred_check_branch
    %15 = sbr.rel (0) target = $region9
  $region8: #{coral_forward.1} parent=0 // pred_region
    _
  $region9: #{coral_forward.1} parent=0 // pred_fallthru
    _
  // Predicated region
  $region10: #{coral_forward.1} parent=0 // pred_check
    _
  $region11: #{coral_forward.1} parent=0 // pred_check_branch
    %17 = sbr.rel (0) target = $region13
  $region12: #{coral_forward.1} parent=0 // pred_region
    _
  $region13: #{coral_forward.1} parent=0 // pred_fallthru
    _
  // Predicated region
  $region14: #{coral_forward.1} parent=0 // pred_check
    _
  $region15: #{coral_forward.1} parent=0 // pred_check_branch
    %19 = sbr.rel (0) target = $region17
  $region16: #{coral_forward.1} parent=0 // pred_region
    _
  $region17: #{coral_forward.1} parent=0 // pred_fallthru
    _
  // Predicated region
  $region18: #{coral_forward.1} parent=0 // pred_check
    _
  $region19: #{coral_forward.1} parent=0 // pred_check_branch
    %21 = sbr.rel (0) target = $region21
  $region20: #{coral_forward.1} parent=0 // pred_region
    _
  $region21: #{coral_forward.1} parent=0 // pred_fallthru
    _
  // Predicated region
  $region22: #{coral_forward.1} parent=0 // pred_check
    _
  $region23: #{coral_forward.1} parent=0 // pred_check_branch
    %23 = sbr.rel (0) target = $region25
  $region24: #{coral_forward.1} parent=0 // pred_region
    _
  $region25: #{coral_forward.1} parent=0 // pred_fallthru
    _
  // Predicated region
  $region26: #{coral_forward.1} parent=0 // pred_check
    _
  $region27: #{coral_forward.1} parent=0 // pred_check_branch
    %25 = sbr.rel (0) target = $region29
  $region28: #{coral_forward.1} parent=0 // pred_region
    _
  $region29: #{coral_forward.1} parent=0 // pred_fallthru
    _
  %v27 = vld [vmem:[%s0] sm:$0xff]
  %v28 = vld [vmem:[%s0 + $0x8] sm:$0xff]
  %v29 = vpack.c.bf16 %v28, %v27
  %v30 = vld [vmem:[%s1] sm:$0xf]
  %v31 = vld [vmem:[%s1 + $0x4] sm:$0xf]
  %v32 = vld [vmem:[%s1 + $0x8] sm:$0xf]
  %v33 = vld [vmem:[%s1 + $0xc] sm:$0xf]
  %v34 = vld [vmem:[%s2] sm:$0x1]
  %v36 = vperm.slane %v34, 0
  %v42 = vunpack.c.l.b16 %v30
  %v43 = vunpack.c.l.b16 %v31
  %v44 = vunpack.c.l.b16 %v32
  %v45 = vunpack.c.l.b16 %v33
  %v46 = vpack.c.b16 %v43, %v42
  %v47 = vpack.c.b16 %v45, %v44
  %vm50 = vcmask 261120
  %v52 = vsel %vm50, %v29, 0
  %54 = vmatpush.bf16.msra.mxu0 0
  %55 = vmatpush.bf16.msra.mxu0 0
  %56 = vmatpush.bf16.msra.mxu0 0
  %57 = vmatpush.bf16.msra.mxu0 0
  %58 = vmatpush.bf16.msra.mxu0 0
  %59 = vmatpush.bf16.msra.mxu0 0
  %60 = vmatpush.bf16.msra.mxu0 %v47
  %61 = vmatpush.bf16.msra.mxu0 %v46
  %62 = vmatmul.bf16.gmra.mxu0 %v52
  %v63 = vpop.f32.mrf.mxu0
  %v64 = vadd.f32 %v36, %v63
  %v65 = vpop.f32.mrf.mxu0
  %v66 = vadd.f32 %v36, %v65
  %67 = vdwg.mxu0
  %v68 = vmax.f32 %v64, 0.0
  %v69 = vmax.f32 %v66, 0.0
  %v70 = vpack.c.bf16 %v69, %v68
  %v71 = vld [vmem:[%s3] sm:$0xf]
  %v72 = vld [vmem:[%s3 + $0x4] sm:$0xf]
  %v73 = vld [vmem:[%s3 + $0x8] sm:$0xf]
  %v74 = vld [vmem:[%s3 + $0xc] sm:$0xf]
  %v75 = vld [vmem:[%s3 + $0x10] sm:$0xf]
  %v76 = vld [vmem:[%s3 + $0x14] sm:$0xf]
  %v77 = vld [vmem:[%s3 + $0x18] sm:$0xf]
  %v78 = vld [vmem:[%s3 + $0x1c] sm:$0xf]
  %v79 = vld [vmem:[%s3 + $0x20] sm:$0xf]
  %v80 = vld [vmem:[%s3 + $0x24] sm:$0xf]
  %v81 = vld [vmem:[%s3 + $0x28] sm:$0xf]
  %v82 = vld [vmem:[%s3 + $0x2c] sm:$0xf]
  %v83 = vld [vmem:[%s3 + $0x30] sm:$0xf]
  %v84 = vld [vmem:[%s3 + $0x34] sm:$0xf]
  %v85 = vld [vmem:[%s3 + $0x38] sm:$0xf]
  %v86 = vld [vmem:[%s3 + $0x3c] sm:$0xf]
  %v87 = vld [vmem:[%s4] sm:$0x1]
  %v89 = vperm.slane %v87, 0
  %v107 = vunpack.c.l.b16 %v71
  %v108 = vunpack.c.l.b16 %v72
  %v109 = vunpack.c.l.b16 %v73
  %v110 = vunpack.c.l.b16 %v74
  %v111 = vunpack.c.l.b16 %v75
  %v112 = vunpack.c.l.b16 %v76
  %v113 = vunpack.c.l.b16 %v77
  %v114 = vunpack.c.l.b16 %v78
  %v115 = vunpack.c.l.b16 %v79
  %v116 = vunpack.c.l.b16 %v80
  %v117 = vunpack.c.l.b16 %v81
  %v118 = vunpack.c.l.b16 %v82
  %v119 = vunpack.c.l.b16 %v83
  %v120 = vunpack.c.l.b16 %v84
  %v121 = vunpack.c.l.b16 %v85
  %v122 = vunpack.c.l.b16 %v86
  %v123 = vpack.c.b16 %v108, %v107
  %v124 = vpack.c.b16 %v110, %v109
  %v125 = vpack.c.b16 %v112, %v111
  %v126 = vpack.c.b16 %v114, %v113
  %v127 = vpack.c.b16 %v116, %v115
  %v128 = vpack.c.b16 %v118, %v117
  %v129 = vpack.c.b16 %v120, %v119
  %v130 = vpack.c.b16 %v122, %v121
  %139 = vmatpush.bf16.msra.mxu0 %v130
  %140 = vmatpush.bf16.msra.mxu0 %v129
  %141 = vmatpush.bf16.msra.mxu0 %v128
  %142 = vmatpush.bf16.msra.mxu0 %v127
  %143 = vmatpush.bf16.msra.mxu0 %v126
  %144 = vmatpush.bf16.msra.mxu0 %v125
  %145 = vmatpush.bf16.msra.mxu0 %v124
  %146 = vmatpush.bf16.msra.mxu0 %v123
  %147 = vmatmul.bf16.gmra.mxu0 %v70
  %v148 = vpop.f32.mrf.mxu0
  %v149 = vadd.f32 %v89, %v148
  %v150 = vpop.f32.mrf.mxu0
  %v151 = vadd.f32 %v89, %v150
  %152 = vdwg.mxu0
  %v153 = vmax.f32 %v149, 0.0
  %v154 = vmax.f32 %v151, 0.0
  %v155 = vld [vmem:[%s5] sm:$0xf]
  %v156 = vpack.c.bf16 %v154, %v153
  %v157 = vld [vmem:[%s6] sm:$0xff]
  %159 = vset.pattern.permute.xlu0 0
  %160 = vperm.xlu0 %159, %v157
  %v161 = vpop.permute.xlu0 %160
  %163 = vmatpush.bf16.xpose.msra.mxu0 0
  %164 = vmatpush.bf16.xpose.msra.mxu0 0
  %165 = vmatpush.bf16.xpose.msra.mxu0 0
  %166 = vmatpush.bf16.xpose.msra.mxu0 0
  %167 = vmatpush.bf16.xpose.msra.mxu0 0
  %168 = vmatpush.bf16.xpose.msra.mxu0 0
  %169 = vmatpush.bf16.xpose.msra.mxu0 0
  %170 = vmatpush.bf16.xpose.msra.mxu0 %v156
  %171 = vmatmul.bf16.gmra.mxu0 %v155
  %v172 = vpop.f32.mrf.mxu0
  %v173 = vadd.f32 %v161, %v172
  %v174 = vpop.f32.mrf.mxu0
  %175 = vdwg.mxu0
  %v176 = vxor.u32 %v173, 2147483648
  %v177 = vmul.f32 %v176, 1.442695
  %v178 = vpow.pop %v177
  %v179 = vadd.f32 %v178, 1.0
  %v180 = vrcp.pop %v179
  %v181 = vmul.f32 %v179, %v180
  %v182 = vsub.f32 1.0, %v181
  %v183 = vmul.f32 %v180, %v182
  %v184 = vadd.f32 %v180, %v183
  %vm185 = vweird.f32 %v179
  %vm186 = vweird.f32 %v180
  %vm187 = vmor %vm185, %vm186
  %v188 = vsel %vm187, %v180, %v184
  %v189 = vand.u32 2147483647, %v179
  %vm190 = vcmp.eq.f32.partialorder %v189, 8.507059e+37
  %v191 = vand.u32 %v179, 2147483648
  %v192 = vor.u32 1.1754944e-38, %v191
  %v193 = vsel %vm190, %v192, %v188
  %v194 = vmul.f32 1.0, %v193
  %vm195 = vcmask 130048
  %196 = vst.msk [vmem:[%s7] sm:$0xff] %vm195, %v194
  // Predicated region
  $region30: #{coral_forward.1} parent=0 // pred_check
    _
  $region31: #{coral_forward.1} parent=0 // pred_check_branch
    %198 = sbr.rel (0) target = $region33
  $region32: #{coral_forward.1} parent=0 // pred_region
    _
  $region33: #{coral_forward.1} parent=0 // pred_fallthru
    _
  // Predicated region
  $region34: #{coral_forward.1} parent=0 // pred_check
    _
  $region35: #{coral_forward.1} parent=0 // pred_check_branch
    %200 = sbr.rel (0) target = $region37
  $region36: #{coral_forward.1} parent=0 // pred_region
    _
  $region37: #{coral_forward.1} parent=0 // pred_fallthru
    _

</llo_original>
